<compile_context>
chip_gen: v7x
topology: tpu7x:2x2x1
jax: 0.10.0
libtpu: 0.0.40
codegen_flags: <defaults>
</compile_context>

<pallas_src>
import math
import functools

import jax
import jax.numpy as jnp
from jax import lax
from jax.experimental import pallas as pl
from jax.experimental.pallas import tpu as pltpu


# ---------------------------------------------------------------------------
# Kernel
# ---------------------------------------------------------------------------
def _ffn_kernel(x_ref, w1_ref, b1_ref, w2_ref, b2_ref, gamma_ref, beta_ref,
                o_ref, acc_ref, *, eps):
    # Grid = (M // tm, I // ti); axis 1 is the reduction over the inner dim.
    k = pl.program_id(1)

    @pl.when(k == 0)
    def _():
        acc_ref[...] = jnp.zeros_like(acc_ref)

    # dense_1 slice: native-dtype operands into the MXU, f32 accumulation.
    h = jnp.dot(x_ref[...], w1_ref[...], preferred_element_type=jnp.float32)
    h = h + b1_ref[...]                                   # (tm, ti) + (1, ti)

    # erf-based gelu (matches the module; gelu is elementwise so tiling I is exact).
    h = h * 0.5 * (1.0 + lax.erf(h / jnp.float32(math.sqrt(2.0))))

    # dense_2 partial product: cast activations to the weight dtype (no-op for f32),
    # accumulate in the f32 scratch.
    acc_ref[...] += jnp.dot(h.astype(w2_ref.dtype), w2_ref[...],
                            preferred_element_type=jnp.float32)

    @pl.when(k == pl.num_programs(1) - 1)
    def _():
        x = x_ref[...].astype(jnp.float32)
        # dropout (inference) -> identity; bias2 + residual.
        r = acc_ref[...] + b2_ref[...] + x
        # LayerNorm over the last dim (biased variance, eps inside rsqrt).
        mean = jnp.mean(r, axis=-1, keepdims=True)
        cen = r - mean
        var = jnp.mean(cen * cen, axis=-1, keepdims=True)
        normed = cen * lax.rsqrt(var + jnp.float32(eps))
        o_ref[...] = (normed * gamma_ref[...] + beta_ref[...]).astype(o_ref.dtype)


# ---------------------------------------------------------------------------
# Tiling / VMEM heuristics
# ---------------------------------------------------------------------------
def _largest_tile(n, cap, mult):
    """Largest divisor of n that is <= cap and a multiple of `mult`; else n."""
    best = None
    d = mult
    while d <= min(n, cap):
        if n % d == 0:
            best = d
        d += mult
    return best if best is not None else n


def _tile_footprint_bytes(tm, ti, H, x_dtype, w_dtype):
    """Double-buffered VMEM footprint estimate for one grid step."""
    isz = jnp.dtype(x_dtype).itemsize
    wsz = jnp.dtype(w_dtype).itemsize
    db = 2  # BlockSpec double buffering
    return (tm * H * isz * db        # x row tile
            + H * ti * wsz * db      # W1^T inner slab
            + ti * 4 * db            # b1 slab (f32)
            + ti * H * wsz * db      # W2^T inner slab
            + 3 * H * 4 * db         # b2, gamma, beta
            + tm * H * isz * db      # output tile
            + tm * H * 4)            # f32 accumulator scratch


def _dedup(seq):
    out = []
    for v in seq:
        if v not in out:
            out.append(v)
    return out


def _choose_tiles(M, I, H, x_dtype, w_dtype, budget=40 << 20):
    """Pick the largest (tm, ti) whose footprint fits the VMEM budget.

    tm is prioritized (weights are re-streamed once per row tile, so bigger tm
    cuts total weight HBM traffic); ti then grows to shorten the reduction loop.
    """
    row_mult = 8 if jnp.dtype(x_dtype).itemsize == 4 else 16
    tm_cands = _dedup([_largest_tile(M, cap, row_mult) for cap in (512, 256, 128, 64)])
    ti_cands = _dedup([_largest_tile(I, cap, 128) for cap in (1024, 512, 256, 128)])
    for tm in tm_cands:
        for ti in ti_cands:
            if _tile_footprint_bytes(tm, ti, H, x_dtype, w_dtype) <= budget:
                return tm, ti
    return tm_cands[-1], ti_cands[-1]


def _vmem_limit_bytes(tm, ti, H, x_dtype, w_dtype):
    est = _tile_footprint_bytes(tm, ti, H, x_dtype, w_dtype)
    # Headroom for Mosaic internals; clamp to a band safe on v5e/v6e (128 MiB
    # physical) and v7x (64 MiB physical VMEM).
    return int(min(max(est + (16 << 20), 32 << 20), 64 << 20))


# ---------------------------------------------------------------------------
# Host-side wrapper
# ---------------------------------------------------------------------------
def prepare_ffn_params(w1, b1, w2, b2, gamma, beta):
    """One-time parameter prep (do NOT call per forward): transpose weights to
    row-major [in, out] layout; keep small vectors in f32 for the epilogue."""
    return (jnp.asarray(w1).T,                                   # (H, I)
            jnp.asarray(b1, jnp.float32).reshape(1, -1),         # (1, I)
            jnp.asarray(w2).T,                                   # (I, H)
            jnp.asarray(b2, jnp.float32).reshape(1, -1),         # (1, H)
            jnp.asarray(gamma, jnp.float32).reshape(1, -1),      # (1, H)
            jnp.asarray(beta, jnp.float32).reshape(1, -1))       # (1, H)


def feed_forward(x, params, *, eps=1e-12, tm=None, ti=None):
    """x: [B, S, H]; params: output of prepare_ffn_params."""
    w1t, b1r, w2t, b2r, g2, bt2 = params
    B, S, H = x.shape
    I = w1t.shape[1]
    M = B * S
    x2 = x.reshape(M, H)

    auto_tm, auto_ti = _choose_tiles(M, I, H, x.dtype, w1t.dtype)
    tm = auto_tm if tm is None else tm
    ti = auto_ti if ti is None else ti
    assert M % tm == 0 and I % ti == 0

    vmem_limit = _vmem_limit_bytes(tm, ti, H, x.dtype, w1t.dtype)
    kernel = functools.partial(_ffn_kernel, eps=eps)

    isz = jnp.dtype(x.dtype).itemsize
    wsz = jnp.dtype(w1t.dtype).itemsize
    cost = pl.CostEstimate(
        flops=4 * M * H * I + 10 * M * H,
        transcendentals=M * I + M,
        bytes_accessed=(2 * M * H * isz                      # x in, out
                        + 2 * H * I * wsz * (M // tm)        # W1, W2 streamed per row tile
                        + (I + 3 * H) * 4))                  # biases / ln params

    out = pl.pallas_call(
        kernel,
        out_shape=jax.ShapeDtypeStruct((M, H), x.dtype),
        grid_spec=pltpu.PrefetchScalarGridSpec(
            num_scalar_prefetch=0,
            grid=(M // tm, I // ti),
            in_specs=[
                pl.BlockSpec((tm, H), lambda i, k: (i, 0)),   # x rows tile
                pl.BlockSpec((H, ti), lambda i, k: (0, k)),   # W1^T inner slab
                pl.BlockSpec((1, ti), lambda i, k: (0, k)),   # b1 inner slab
                pl.BlockSpec((ti, H), lambda i, k: (k, 0)),   # W2^T inner slab
                pl.BlockSpec((1, H), lambda i, k: (0, 0)),    # b2
                pl.BlockSpec((1, H), lambda i, k: (0, 0)),    # gamma
                pl.BlockSpec((1, H), lambda i, k: (0, 0)),    # beta
            ],
            out_specs=pl.BlockSpec((tm, H), lambda i, k: (i, 0)),
            scratch_shapes=[pltpu.VMEM((tm, H), jnp.float32)],
        ),
        compiler_params=pltpu.CompilerParams(
            dimension_semantics=("parallel", "arbitrary"),
            vmem_limit_bytes=vmem_limit),
        cost_estimate=cost,
    )(x2, w1t, b1r, w2t, b2r, g2, bt2)

    return out.reshape(B, S, H)


# ---------------------------------------------------------------------------
# Pure-JAX reference and test
# ---------------------------------------------------------------------------
def _reference(x, w1, b1, w2, b2, gamma, beta, eps=1e-12):
    x32 = x.astype(jnp.float32)
    h = x32 @ w1.T.astype(jnp.float32) + b1
    h = h * 0.5 * (1.0 + lax.erf(h / jnp.float32(math.sqrt(2.0))))
    y = h @ w2.T.astype(jnp.float32) + b2
    r = y + x32
    mean = jnp.mean(r, axis=-1, keepdims=True)
    var = jnp.mean((r - mean) ** 2, axis=-1, keepdims=True)
    return ((r - mean) * lax.rsqrt(var + eps) * gamma + beta).astype(x.dtype)


def _make_params(key, H, I):
    k1, k2, k3, k4 = jax.random.split(key, 4)
    bound1 = 1.0 / math.sqrt(H)
    bound2 = 1.0 / math.sqrt(I)
    w1 = jax.random.uniform(k1, (I, H), minval=-bound1, maxval=bound1, dtype=jnp.float32)
    b1 = jax.random.uniform(k2, (I,), minval=-bound1, maxval=bound1, dtype=jnp.float32)
    w2 = jax.random.uniform(k3, (H, I), minval=-bound2, maxval=bound2, dtype=jnp.float32)
    b2 = jax.random.uniform(k4, (H,), minval=-bound2, maxval=bound2, dtype=jnp.float32)
    gamma = jnp.ones((H,), dtype=jnp.float32)
    beta = jnp.zeros((H,), dtype=jnp.float32)
    return w1, b1, w2, b2, gamma, beta


if __name__ == "__main__":
    eps = 1e-12

    # --- Primary small test (module-consistent shapes: batch=2, seq=8, hidden=32,
    #     inner=64). Single-step grid; tight-tolerance check vs f32 reference. ---
    kx, kp = jax.random.split(jax.random.PRNGKey(0))
    B, S, H, I = 2, 8, 32, 64
    x = jax.random.normal(kx, (B, S, H), dtype=jnp.float32)
    raw = _make_params(kp, H, I)
    params = prepare_ffn_params(*raw)

    out = jax.block_until_ready(feed_forward(x, params, eps=eps))
    ref = _reference(x, *raw, eps=eps)
    assert out.shape == (B, S, H)
    assert jnp.allclose(out, ref, atol=1e-5, rtol=1e-5), "mismatch vs reference (small)"

    # --- Secondary tests at a larger shape: (a) explicit small tiles to exercise the
    #     pipelined multi-step grid (row tiling + inner-dim accumulation), and
    #     (b) auto-chosen big tiles (the production path). Looser tolerance:
    #     different f32 accumulation order at I=1024. ---
    kx2, kp2 = jax.random.split(jax.random.PRNGKey(1))
    B2, S2, H2, I2 = 4, 128, 128, 1024
    x2 = jax.random.normal(kx2, (B2, S2, H2), dtype=jnp.float32)
    raw2 = _make_params(kp2, H2, I2)
    params2 = prepare_ffn_params(*raw2)
    ref2 = _reference(x2, *raw2, eps=eps)

    out2a = jax.block_until_ready(feed_forward(x2, params2, eps=eps, tm=128, ti=256))
    assert out2a.shape == (B2, S2, H2)
    assert jnp.allclose(out2a, ref2, atol=2e-3, rtol=2e-3), "mismatch vs reference (tiled)"

    out2b = jax.block_until_ready(feed_forward(x2, params2, eps=eps))
    assert jnp.allclose(out2b, ref2, atol=2e-3, rtol=2e-3), "mismatch vs reference (auto tiles)"

    print("KERNEL_OK")
</pallas_src>

<mosaic_0001>
module attributes {stable_mosaic.version = 11 : i64} {
  func.func @_ffn_kernel(%arg0: i32, %arg1: i32, %arg2: memref<16x32xf32, #tpu.memory_space<vmem>>, %arg3: memref<32x64xf32, #tpu.memory_space<vmem>>, %arg4: memref<1x64xf32, #tpu.memory_space<vmem>>, %arg5: memref<64x32xf32, #tpu.memory_space<vmem>>, %arg6: memref<1x32xf32, #tpu.memory_space<vmem>>, %arg7: memref<1x32xf32, #tpu.memory_space<vmem>>, %arg8: memref<1x32xf32, #tpu.memory_space<vmem>>, %arg9: memref<16x32xf32, #tpu.memory_space<vmem>>, %arg10: memref<16x32xf32, #tpu.memory_space<vmem>>) attributes {dimension_semantics = [#tpu.dimension_semantics<parallel>, #tpu.dimension_semantics<arbitrary>], iteration_bounds = array<i64: 1, 1>, scalar_prefetch = 0 : i64, scratch_operands = 1 : i64, tpu.core_type = #tpu.core_type<tc>, window_params = [{transform_indices = @transform_0, window_bounds = array<i64: 16, 32>}, {transform_indices = @transform_1, window_bounds = array<i64: 32, 64>}, {transform_indices = @transform_2, window_bounds = array<i64: 1, 64>}, {transform_indices = @transform_3, window_bounds = array<i64: 64, 32>}, {pipeline_mode = #tpu.pipeline_mode<synchronous>, transform_indices = @transform_4, window_bounds = array<i64: 1, 32>}, {pipeline_mode = #tpu.pipeline_mode<synchronous>, transform_indices = @transform_5, window_bounds = array<i64: 1, 32>}, {pipeline_mode = #tpu.pipeline_mode<synchronous>, transform_indices = @transform_6, window_bounds = array<i64: 1, 32>}, {transform_indices = @transform_7, window_bounds = array<i64: 16, 32>}]} {
    %c0_i32 = arith.constant 0 : i32
    %0 = arith.cmpi eq, %arg1, %c0_i32 : i32
    %1 = arith.extui %0 : i1 to i32
    %c0_i32_0 = arith.constant 0 : i32
    %2 = arith.cmpi ne, %1, %c0_i32_0 : i32
    scf.if %2 {
      %cst_18 = arith.constant 0.000000e+00 : f32
      %25 = vector.broadcast %cst_18 : f32 to vector<16x32xf32>
      %c0_19 = arith.constant 0 : index
      %c0_20 = arith.constant 0 : index
      %26 = vector.load %arg10[%c0_19, %c0_20] : memref<16x32xf32, #tpu.memory_space<vmem>>, vector<16x32xf32>
      tpu.vector_store %arg10[%c0_19, %c0_20], %25 {strides = array<i32>} : memref<16x32xf32, #tpu.memory_space<vmem>>, vector<16x32xf32>,
    } else {
    }
    %c0 = arith.constant 0 : index
    %c0_1 = arith.constant 0 : index
    %3 = vector.load %arg2[%c0, %c0_1] : memref<16x32xf32, #tpu.memory_space<vmem>>, vector<16x32xf32>
    %c0_2 = arith.constant 0 : index
    %c0_3 = arith.constant 0 : index
    %4 = vector.load %arg3[%c0_2, %c0_3] : memref<32x64xf32, #tpu.memory_space<vmem>>, vector<32x64xf32>
    %cst = arith.constant dense<0.000000e+00> : vector<16x64xf32>
    %5 = tpu.matmul %3, %4, %cst {dimension_numbers = #tpu.dot_dimension_numbers<[1], [0], [0], [1], [0, 0, 1, 1], [], []>} : vector<16x32xf32>, vector<32x64xf32>, vector<16x64xf32> -> vector<16x64xf32>
    %c0_4 = arith.constant 0 : index
    %c0_5 = arith.constant 0 : index
    %6 = vector.load %arg4[%c0_4, %c0_5] : memref<1x64xf32, #tpu.memory_space<vmem>>, vector<1x64xf32>
    %7 = vector.broadcast %6 : vector<1x64xf32> to vector<16x64xf32>
    %8 = arith.addf %5, %7 : vector<16x64xf32>
    %cst_6 = arith.constant 5.000000e-01 : f32
    %9 = vector.broadcast %cst_6 : f32 to vector<16x64xf32>
    %10 = arith.mulf %8, %9 : vector<16x64xf32>
    %cst_7 = arith.constant 1.41421354 : f32
    %11 = vector.broadcast %cst_7 : f32 to vector<16x64xf32>
    %12 = arith.divf %8, %11 : vector<16x64xf32>
    %13 = math.erf %12 : vector<16x64xf32>
    %cst_8 = arith.constant 1.000000e+00 : f32
    %14 = vector.broadcast %cst_8 : f32 to vector<16x64xf32>
    %15 = arith.addf %14, %13 : vector<16x64xf32>
    %16 = arith.mulf %10, %15 : vector<16x64xf32>
    %c0_9 = arith.constant 0 : index
    %c0_10 = arith.constant 0 : index
    %17 = vector.load %arg10[%c0_9, %c0_10] : memref<16x32xf32, #tpu.memory_space<vmem>>, vector<16x32xf32>
    %c0_11 = arith.constant 0 : index
    %c0_12 = arith.constant 0 : index
    %18 = vector.load %arg5[%c0_11, %c0_12] : memref<64x32xf32, #tpu.memory_space<vmem>>, vector<64x32xf32>
    %cst_13 = arith.constant dense<0.000000e+00> : vector<16x32xf32>
    %19 = tpu.matmul %16, %18, %cst_13 {dimension_numbers = #tpu.dot_dimension_numbers<[1], [0], [0], [1], [0, 0, 1, 1], [], []>} : vector<16x64xf32>, vector<64x32xf32>, vector<16x32xf32> -> vector<16x32xf32>
    %20 = arith.addf %17, %19 : vector<16x32xf32>
    %c0_14 = arith.constant 0 : index
    %c0_15 = arith.constant 0 : index
    %21 = vector.load %arg10[%c0_14, %c0_15] : memref<16x32xf32, #tpu.memory_space<vmem>>, vector<16x32xf32>
    tpu.vector_store %arg10[%c0_14, %c0_15], %20 {strides = array<i32>} : memref<16x32xf32, #tpu.memory_space<vmem>>, vector<16x32xf32>,
    %c0_i32_16 = arith.constant 0 : i32
    %22 = arith.cmpi eq, %arg1, %c0_i32_16 : i32
    %23 = arith.extui %22 : i1 to i32
    %c0_i32_17 = arith.constant 0 : i32
    %24 = arith.cmpi ne, %23, %c0_i32_17 : i32
    scf.if %24 {
      %c0_18 = arith.constant 0 : index
      %c0_19 = arith.constant 0 : index
      %25 = vector.load %arg2[%c0_18, %c0_19] : memref<16x32xf32, #tpu.memory_space<vmem>>, vector<16x32xf32>
      %c0_20 = arith.constant 0 : index
      %c0_21 = arith.constant 0 : index
      %26 = vector.load %arg10[%c0_20, %c0_21] : memref<16x32xf32, #tpu.memory_space<vmem>>, vector<16x32xf32>
      %c0_22 = arith.constant 0 : index
      %c0_23 = arith.constant 0 : index
      %27 = vector.load %arg6[%c0_22, %c0_23] : memref<1x32xf32, #tpu.memory_space<vmem>>, vector<1x32xf32>
      %28 = vector.broadcast %27 : vector<1x32xf32> to vector<16x32xf32>
      %29 = arith.addf %26, %28 : vector<16x32xf32>
      %30 = arith.addf %29, %25 : vector<16x32xf32>
      %cst_24 = arith.constant dense<0.000000e+00> : vector<16xf32>
      %31 = vector.multi_reduction <add>, %30, %cst_24 [1] : vector<16x32xf32> to vector<16xf32>
      %32 = vector.shape_cast %31 : vector<16xf32> to vector<16x1xf32>
      %cst_25 = arith.constant 3.200000e+01 : f32
      %33 = vector.broadcast %cst_25 : f32 to vector<16x1xf32>
      %34 = arith.divf %32, %33 : vector<16x1xf32>
      %35 = vector.broadcast %34 : vector<16x1xf32> to vector<16x32xf32>
      %36 = arith.subf %30, %35 : vector<16x32xf32>
      %37 = arith.mulf %36, %36 : vector<16x32xf32>
      %cst_26 = arith.constant dense<0.000000e+00> : vector<16xf32>
      %38 = vector.multi_reduction <add>, %37, %cst_26 [1] : vector<16x32xf32> to vector<16xf32>
      %39 = vector.shape_cast %38 : vector<16xf32> to vector<16x1xf32>
      %cst_27 = arith.constant 3.200000e+01 : f32
      %40 = vector.broadcast %cst_27 : f32 to vector<16x1xf32>
      %41 = arith.divf %39, %40 : vector<16x1xf32>
      %cst_28 = arith.constant 9.99999996E-13 : f32
      %42 = vector.broadcast %cst_28 : f32 to vector<16x1xf32>
      %43 = arith.addf %41, %42 : vector<16x1xf32>
      %44 = math.rsqrt %43 : vector<16x1xf32>
      %45 = vector.broadcast %44 : vector<16x1xf32> to vector<16x32xf32>
      %46 = arith.mulf %36, %45 : vector<16x32xf32>
      %c0_29 = arith.constant 0 : index
      %c0_30 = arith.constant 0 : index
      %47 = vector.load %arg7[%c0_29, %c0_30] : memref<1x32xf32, #tpu.memory_space<vmem>>, vector<1x32xf32>
      %48 = vector.broadcast %47 : vector<1x32xf32> to vector<16x32xf32>
      %49 = arith.mulf %46, %48 : vector<16x32xf32>
      %c0_31 = arith.constant 0 : index
      %c0_32 = arith.constant 0 : index
      %50 = vector.load %arg8[%c0_31, %c0_32] : memref<1x32xf32, #tpu.memory_space<vmem>>, vector<1x32xf32>
      %51 = vector.broadcast %50 : vector<1x32xf32> to vector<16x32xf32>
      %52 = arith.addf %49, %51 : vector<16x32xf32>
      %c0_33 = arith.constant 0 : index
      %c0_34 = arith.constant 0 : index
      %53 = vector.load %arg9[%c0_33, %c0_34] : memref<16x32xf32, #tpu.memory_space<vmem>>, vector<16x32xf32>
      tpu.vector_store %arg9[%c0_33, %c0_34], %52 {strides = array<i32>} : memref<16x32xf32, #tpu.memory_space<vmem>>, vector<16x32xf32>,
    } else {
    }
    return
  }
  func.func @transform_0(%arg0: i32, %arg1: i32) -> (i32, i32) {
    %c0_i32 = arith.constant 0 : i32
    %c0_i32_0 = arith.constant 0 : i32
    return %arg0, %c0_i32 : i32, i32
  }
  func.func @transform_1(%arg0: i32, %arg1: i32) -> (i32, i32) {
    %c0_i32 = arith.constant 0 : i32
    %c0_i32_0 = arith.constant 0 : i32
    return %c0_i32, %arg1 : i32, i32
  }
  func.func @transform_2(%arg0: i32, %arg1: i32) -> (i32, i32) {
    %c0_i32 = arith.constant 0 : i32
    %c0_i32_0 = arith.constant 0 : i32
    return %c0_i32, %arg1 : i32, i32
  }
  func.func @transform_3(%arg0: i32, %arg1: i32) -> (i32, i32) {
    %c0_i32 = arith.constant 0 : i32
    %c0_i32_0 = arith.constant 0 : i32
    return %arg1, %c0_i32 : i32, i32
  }
  func.func @transform_4(%arg0: i32, %arg1: i32) -> (i32, i32) {
    %c0_i32 = arith.constant 0 : i32
    %c0_i32_0 = arith.constant 0 : i32
    %c0_i32_1 = arith.constant 0 : i32
    return %c0_i32, %c0_i32_0 : i32, i32
  }
  func.func @transform_5(%arg0: i32, %arg1: i32) -> (i32, i32) {
    %c0_i32 = arith.constant 0 : i32
    %c0_i32_0 = arith.constant 0 : i32
    %c0_i32_1 = arith.constant 0 : i32
    return %c0_i32, %c0_i32_0 : i32, i32
  }
  func.func @transform_6(%arg0: i32, %arg1: i32) -> (i32, i32) {
    %c0_i32 = arith.constant 0 : i32
    %c0_i32_0 = arith.constant 0 : i32
    %c0_i32_1 = arith.constant 0 : i32
    return %c0_i32, %c0_i32_0 : i32, i32
  }
  func.func @transform_7(%arg0: i32, %arg1: i32) -> (i32, i32) {
    %c0_i32 = arith.constant 0 : i32
    %c0_i32_0 = arith.constant 0 : i32
    return %arg0, %c0_i32 : i32, i32
  }
}

</mosaic_0001>

<llo_original>
// kernel: tpu_custom_call.1
$region0: #{tpu_custom_call.1}
  #allocation0 [shape = 'u32[]', space=smem, size = 0x4, offset = 0x4, fixed_abs, tag = 'smem constant byte address 0x4 - core index']
  #allocation1 [shape = 'u32[144,128]{1,0:T(1,128)}', space=vmem, size = 0x12000, scoped, tag = 'internal scratch']
  #allocation2 [shape = 'f32[16,32]{1,0:T(8,128)}', space=vmem, size = 0x2000, scoped, tag = 'scratch operand']
  %s0 = inlined_call_operand.vmem [shape: f32[16,32], index: 0, kind: input, shape index: {}]
  %s1 = inlined_call_operand.vmem [shape: f32[32,64], index: 1, kind: input, shape index: {}]
  %s2 = inlined_call_operand.vmem [shape: f32[1,64], index: 2, kind: input, shape index: {}]
  %s3 = inlined_call_operand.vmem [shape: f32[64,32], index: 3, kind: input, shape index: {}]
  %s4 = inlined_call_operand.vmem [shape: f32[1,32], index: 4, kind: input, shape index: {}]
  %s5 = inlined_call_operand.vmem [shape: f32[1,32], index: 5, kind: input, shape index: {}]
  %s6 = inlined_call_operand.vmem [shape: f32[1,32], index: 6, kind: input, shape index: {}]
  %s7 = inlined_call_operand.hbm [shape: f32[16,32], index: 7, kind: output, shape index: {}]
  %s8 = sld [smem:[#allocation0]]
  $region46: #{tpu_custom_call.1} parent=0
    _
  %s10 = ssub.s32 1, %s8
  %s11 = scalar_select 0, %s10, %s8
  $region1: #{tpu_custom_call.1} parent=0
    #allocation3 [shape = 'u8[8192]{0}', space=vmem, size = 0x2000, scoped, tag = 'output window, operand 0, single buffered']
    #allocation4 [shape = 's32[1]{0}', space=sflag, size = 0x4, scoped, tag = 'scoped memory for tpu_custom_call.1']
    %12 = vsyncpa [#allocation4], 0
    // Predicated region
    $region2: #{tpu_custom_call.1} parent=1 // pred_check
      _
    $region3: #{tpu_custom_call.1} parent=1 // pred_check_branch
      %14 = sbr.rel (0) target = $region5
    $region4: #{tpu_custom_call.1} parent=1 // pred_region
      _
    $region5: #{tpu_custom_call.1} parent=1 // pred_fallthru
      _
    // Predicated region
    $region6: #{tpu_custom_call.1} parent=1 // pred_check
      _
    $region7: #{tpu_custom_call.1} parent=1 // pred_check_branch
      %16 = sbr.rel (0) target = $region9
    $region8: #{tpu_custom_call.1} parent=1 // pred_region
      _
    $region9: #{tpu_custom_call.1} parent=1 // pred_fallthru
      _
    // Predicated region
    $region10: #{tpu_custom_call.1} parent=1 // pred_check
      _
    $region11: #{tpu_custom_call.1} parent=1 // pred_check_branch
      %18 = sbr.rel (0) target = $region13
    $region12: #{tpu_custom_call.1} parent=1 // pred_region
      _
    $region13: #{tpu_custom_call.1} parent=1 // pred_fallthru
      _
    // Predicated region
    $region14: #{tpu_custom_call.1} parent=1 // pred_check
      _
    $region15: #{tpu_custom_call.1} parent=1 // pred_check_branch
      %20 = sbr.rel (0) target = $region17
    $region16: #{tpu_custom_call.1} parent=1 // pred_region
      _
    $region17: #{tpu_custom_call.1} parent=1 // pred_fallthru
      _
    // Predicated region
    $region18: #{tpu_custom_call.1} parent=1 // pred_check
      _
    $region19: #{tpu_custom_call.1} parent=1 // pred_check_branch
      %22 = sbr.rel (0) target = $region21
    $region20: #{tpu_custom_call.1} parent=1 // pred_region
      _
    $region21: #{tpu_custom_call.1} parent=1 // pred_fallthru
      _
    // Predicated region
    $region22: #{tpu_custom_call.1} parent=1 // pred_check
      _
    $region23: #{tpu_custom_call.1} parent=1 // pred_check_branch
      %24 = sbr.rel (0) target = $region25
    $region24: #{tpu_custom_call.1} parent=1 // pred_region
      _
    $region25: #{tpu_custom_call.1} parent=1 // pred_fallthru
      _
    // Predicated region
    $region26: #{tpu_custom_call.1} parent=1 // pred_check
      _
    $region27: #{tpu_custom_call.1} parent=1 // pred_check_branch
      %26 = sbr.rel (0) target = $region29
    $region28: #{tpu_custom_call.1} parent=1 // pred_region
      _
    $region29: #{tpu_custom_call.1} parent=1 // pred_fallthru
      _
    %p27 = scmp.eq.s32.totalorder 0, 0
    // Predicated region
    $region30: #{tpu_custom_call.1} parent=1 // pred_check
      %p28 = pneg %p27
    $region31: #{tpu_custom_call.1} parent=1 // pred_check_branch
      %30 = sbr.rel (%p28) target = $region33
    $region32: #{tpu_custom_call.1} parent=1 // pred_region
      %vm31 = vcmask 261120
      %32 = vst.msk [vmem:[#allocation2] sm:$0xff] %vm31, 0.0
      %33 = vst.msk [vmem:[#allocation2 + $0x8] sm:$0xff] %vm31, 0.0
    $region33: #{tpu_custom_call.1} parent=1 // pred_fallthru
      _
    %v34 = vld [vmem:[%s0] sm:$0xff]
    %v35 = vld [vmem:[%s0 + $0x8] sm:$0xff]
    %v36 = vld [vmem:[%s1] sm:$0xff]
    %v37 = vld [vmem:[%s1 + $0x8] sm:$0xff]
    %v38 = vld [vmem:[%s1 + $0x10] sm:$0xff]
    %v39 = vld [vmem:[%s1 + $0x18] sm:$0xff]
    %v40 = vld [vmem:[%s2] sm:$0x1]
    %v42 = vlaneseq
    %v43 = vshrl.u32 %v42, 7
    %v44 = vsub.s32 0, %v43
    %v45 = vrot.slane %v40, %v44
    %vm47 = vcmask 261120
    %v49 = vsel %vm47, %v34, 0
    %v52 = vsel %vm47, %v35, 0
    %54 = vmatprep.subr.mxu0 0.0
    %55 = vmatpush1.msra.mxu0 %v36
    %56 = vmatprep.subr.mxu0 0.0
    %57 = vmatpush1.msra.mxu0 %v37
    %58 = vmatprep.subr.mxu0 0.0
    %59 = vmatpush1.msra.mxu0 %v38
    %60 = vmatprep.subr.mxu0 0.0
    %61 = vmatpush1.msra.mxu0 %v39
    %62 = vmatprep.subr.mxu0 0.0
    %63 = vmatpush1.msra.mxu0 0.0
    %64 = vmatprep.subr.mxu0 0.0
    %65 = vmatpush1.msra.mxu0 0.0
    %66 = vmatprep.subr.mxu0 0.0
    %67 = vmatpush1.msra.mxu0 0.0
    %68 = vmatprep.subr.mxu0 0.0
    %69 = vmatpush1.msra.mxu0 0.0
    %70 = vmatprep.subr.mxu0 0.0
    %71 = vmatpush1.msra.mxu0 0.0
    %72 = vmatprep.subr.mxu0 0.0
    %73 = vmatpush1.msra.mxu0 0.0
    %74 = vmatprep.subr.mxu0 0.0
    %75 = vmatpush1.msra.mxu0 0.0
    %76 = vmatprep.subr.mxu0 0.0
    %77 = vmatpush1.msra.mxu0 0.0
    %78 = vmatprep.subr.mxu0 0.0
    %79 = vmatpush1.msra.mxu0 0.0
    %80 = vmatprep.subr.mxu0 0.0
    %81 = vmatpush1.msra.mxu0 0.0
    %82 = vmatprep.subr.mxu0 0.0
    %83 = vmatpush1.msra.mxu0 0.0
    %84 = vmatprep.subr.mxu0 0.0
    %85 = vmatpush1.msra.mxu0 0.0
    %86 = vmatprep.subr.mxu0 0.0
    %87 = vmatpush1.msra.mxu0 0.0
    %88 = vmatprep.subr.mxu0 0.0
    %89 = vmatpush1.msra.mxu0 0.0
    %90 = vmatprep.subr.mxu0 0.0
    %91 = vmatpush1.msra.mxu0 0.0
    %92 = vmatprep.subr.mxu0 0.0
    %93 = vmatpush1.msra.mxu0 0.0
    %94 = vmatprep.subr.mxu0 0.0
    %95 = vmatpush1.msra.mxu0 0.0
    %96 = vmatprep.subr.mxu0 0.0
    %97 = vmatpush1.msra.mxu0 0.0
    %98 = vmatprep.subr.mxu0 0.0
    %99 = vmatpush1.msra.mxu0 0.0
    %100 = vmatprep.subr.mxu0 0.0
    %101 = vmatpush1.msra.mxu0 0.0
    %102 = vmatprep.subr.mxu0 0.0
    %103 = vmatpush1.msra.mxu0 0.0
    %104 = vmatprep.subr.mxu0 0.0
    %105 = vmatpush1.msra.mxu0 0.0
    %106 = vmatprep.subr.mxu0 0.0
    %107 = vmatpush1.msra.mxu0 0.0
    %108 = vmatprep.subr.mxu0 0.0
    %109 = vmatpush1.msra.mxu0 0.0
    %110 = vmatprep.subr.mxu0 0.0
    %111 = vmatpush1.msra.mxu0 0.0
    %112 = vmatprep.subr.mxu0 0.0
    %113 = vmatpush1.msra.mxu0 0.0
    %114 = vmatprep.subr.mxu0 0.0
    %115 = vmatpush1.msra.mxu0 0.0
    %116 = vmatprep.subr.mxu0 0.0
    %117 = vmatpush1.msra.mxu0 0.0
    %118 = vmatprep.mubr.f32.mxu0 0.0
    %119 = vmatmul.mubr.f32.gmra.mrb[0].mxu0 %v49
    %v120 = vpop.f32.mrb[0].mxu0
    %v121 = vadd.f32 %v45, %v120
    %v122 = vpop.f32.mrb[0].mxu0
    %123 = vmatprep.mubr.f32.mxu0 0.0
    %124 = vmatmul.mubr.f32.gmra.mrb[0].mxu0 %v52
    %v125 = vpop.f32.mrb[0].mxu0
    %v126 = vadd.f32 %v45, %v125
    %v127 = vpop.f32.mrb[0].mxu0
    %128 = vdwg.mxu0
    %v129 = vmul.f32 %v121, 0.5
    %v130 = vmul.f32 %v126, 0.5
    %v131 = vrcp.pop 1.4142135
    %v132 = vmul.f32 %v121, %v131
    %v133 = vmul.f32 %v126, %v131
    %v134 = verf.f32.pop %v132
    %v135 = verf.f32.pop %v133
    %v136 = vadd.f32 %v134, 1.0
    %v137 = vadd.f32 %v135, 1.0
    %v138 = vmul.f32 %v129, %v136
    %v139 = vmul.f32 %v130, %v137
    %v140 = vld [vmem:[#allocation2] sm:$0xff]
    %v141 = vld [vmem:[#allocation2 + $0x8] sm:$0xff]
    %v142 = vld [vmem:[%s3] sm:$0xff]
    %v143 = vld [vmem:[%s3 + $0x8] sm:$0xff]
    %v144 = vld [vmem:[%s3 + $0x10] sm:$0xff]
    %v145 = vld [vmem:[%s3 + $0x18] sm:$0xff]
    %v146 = vld [vmem:[%s3 + $0x20] sm:$0xff]
    %v147 = vld [vmem:[%s3 + $0x28] sm:$0xff]
    %v148 = vld [vmem:[%s3 + $0x30] sm:$0xff]
    %v149 = vld [vmem:[%s3 + $0x38] sm:$0xff]
    %vm150 = vcmask 523264
    %v152 = vsel %vm150, %v138, 0
    %v155 = vsel %vm150, %v139, 0
    %157 = vmatprep.subr.mxu0 0.0
    %158 = vmatpush1.msra.mxu0 %v142
    %159 = vmatprep.subr.mxu0 0.0
    %160 = vmatpush1.msra.mxu0 %v143
    %161 = vmatprep.subr.mxu0 0.0
    %162 = vmatpush1.msra.mxu0 %v144
    %163 = vmatprep.subr.mxu0 0.0
    %164 = vmatpush1.msra.mxu0 %v145
    %165 = vmatprep.subr.mxu0 0.0
    %166 = vmatpush1.msra.mxu0 %v146
    %167 = vmatprep.subr.mxu0 0.0
    %168 = vmatpush1.msra.mxu0 %v147
    %169 = vmatprep.subr.mxu0 0.0
    %170 = vmatpush1.msra.mxu0 %v148
    %171 = vmatprep.subr.mxu0 0.0
    %172 = vmatpush1.msra.mxu0 %v149
    %173 = vmatprep.subr.mxu0 0.0
    %174 = vmatpush1.msra.mxu0 0.0
    %175 = vmatprep.subr.mxu0 0.0
    %176 = vmatpush1.msra.mxu0 0.0
    %177 = vmatprep.subr.mxu0 0.0
    %178 = vmatpush1.msra.mxu0 0.0
    %179 = vmatprep.subr.mxu0 0.0
    %180 = vmatpush1.msra.mxu0 0.0
    %181 = vmatprep.subr.mxu0 0.0
    %182 = vmatpush1.msra.mxu0 0.0
    %183 = vmatprep.subr.mxu0 0.0
    %184 = vmatpush1.msra.mxu0 0.0
    %185 = vmatprep.subr.mxu0 0.0
    %186 = vmatpush1.msra.mxu0 0.0
    %187 = vmatprep.subr.mxu0 0.0
    %188 = vmatpush1.msra.mxu0 0.0
    %189 = vmatprep.subr.mxu0 0.0
    %190 = vmatpush1.msra.mxu0 0.0
    %191 = vmatprep.subr.mxu0 0.0
    %192 = vmatpush1.msra.mxu0 0.0
    %193 = vmatprep.subr.mxu0 0.0
    %194 = vmatpush1.msra.mxu0 0.0
    %195 = vmatprep.subr.mxu0 0.0
    %196 = vmatpush1.msra.mxu0 0.0
    %197 = vmatprep.subr.mxu0 0.0
    %198 = vmatpush1.msra.mxu0 0.0
    %199 = vmatprep.subr.mxu0 0.0
    %200 = vmatpush1.msra.mxu0 0.0
    %201 = vmatprep.subr.mxu0 0.0
    %202 = vmatpush1.msra.mxu0 0.0
    %203 = vmatprep.subr.mxu0 0.0
    %204 = vmatpush1.msra.mxu0 0.0
    %205 = vmatprep.subr.mxu0 0.0
    %206 = vmatpush1.msra.mxu0 0.0
    %207 = vmatprep.subr.mxu0 0.0
    %208 = vmatpush1.msra.mxu0 0.0
    %209 = vmatprep.subr.mxu0 0.0
    %210 = vmatpush1.msra.mxu0 0.0
    %211 = vmatprep.subr.mxu0 0.0
    %212 = vmatpush1.msra.mxu0 0.0
    %213 = vmatprep.subr.mxu0 0.0
    %214 = vmatpush1.msra.mxu0 0.0
    %215 = vmatprep.subr.mxu0 0.0
    %216 = vmatpush1.msra.mxu0 0.0
    %217 = vmatprep.subr.mxu0 0.0
    %218 = vmatpush1.msra.mxu0 0.0
    %219 = vmatprep.subr.mxu0 0.0
    %220 = vmatpush1.msra.mxu0 0.0
    %221 = vmatprep.mubr.f32.mxu0 0.0
    %222 = vmatmul.mubr.f32.gmra.mrb[0].mxu0 %v152
    %v223 = vpop.f32.mrb[0].mxu0
    %v224 = vadd.f32 0.0, %v223
    %v225 = vpop.f32.mrb[0].mxu0
    %226 = vmatprep.mubr.f32.mxu0 0.0
    %227 = vmatmul.mubr.f32.gmra.mrb[0].mxu0 %v155
    %v228 = vpop.f32.mrb[0].mxu0
    %v229 = vadd.f32 0.0, %v228
    %v230 = vpop.f32.mrb[0].mxu0
    %231 = vdwg.mxu0
    %v232 = vadd.f32 %v140, %v224
    %v233 = vadd.f32 %v141, %v229
    %234 = vst.msk [vmem:[#allocation2] sm:$0xff] %vm47, %v232
    %235 = vst.msk [vmem:[#allocation2 + $0x8] sm:$0xff] %vm47, %v233
    // Predicated region
    $region34: #{tpu_custom_call.1} parent=1 // pred_check
      %p236 = pneg %p27
    $region35: #{tpu_custom_call.1} parent=1 // pred_check_branch
      %238 = sbr.rel (%p236) target = $region37
    $region36: #{tpu_custom_call.1} parent=1 // pred_region
      %v239 = vld [vmem:[%s0] sm:$0xff]
      %v240 = vld [vmem:[%s0 + $0x8] sm:$0xff]
      %v241 = vld [vmem:[#allocation2] sm:$0xff]
      %v242 = vld [vmem:[#allocation2 + $0x8] sm:$0xff]
      %v243 = vld [vmem:[%s4] sm:$0x1]
      %v245 = vlaneseq
      %v246 = vshrl.u32 %v245, 7
      %v247 = vsub.s32 0, %v246
      %v248 = vrot.slane %v243, %v247
      %v250 = vadd.f32 %v241, %v248
      %v251 = vadd.f32 %v242, %v248
      %v252 = vadd.f32 %v250, %v239
      %v253 = vadd.f32 %v251, %v240
      %v254 = vsel %vm47, %v252, 0.0
      %255 = vadd.xlane.f32.xlu0 %v254
      %v256 = vpop.xlane.xlu0 %255
      %v257 = vsel %vm47, %v253, 0.0
      %258 = vadd.xlane.f32.xlu0 %v257
      %v259 = vpop.xlane.xlu0 %258
      %v260 = vrcp.pop 32.0
      %v261 = vmul.f32 %v256, %v260
      %v262 = vmul.f32 %v259, %v260
      %v263 = vsub.f32 %v252, %v261
      %v264 = vsub.f32 %v253, %v262
      %v265 = vmul.f32 %v263, %v263
      %v266 = vmul.f32 %v264, %v264
      %v267 = vsel %vm47, %v265, 0.0
      %268 = vadd.xlane.f32.xlu0 %v267
      %v269 = vpop.xlane.xlu0 %268
      %v270 = vsel %vm47, %v266, 0.0
      %271 = vadd.xlane.f32.xlu0 %v270
      %v272 = vpop.xlane.xlu0 %271
      %v273 = vmul.f32 %v269, %v260
      %v274 = vmul.f32 %v272, %v260
      %v275 = vadd.f32 %v273, 1e-12
      %v276 = vadd.f32 %v274, 1e-12
      %v277 = vrsqrt.pop %v275
      %v278 = vrsqrt.pop %v276
      %v279 = vmul.f32 %v263, %v277
      %v280 = vmul.f32 %v264, %v278
      %v281 = vld [vmem:[%s5] sm:$0x1]
      %v283 = vlaneseq
      %v284 = vshrl.u32 %v283, 7
      %v285 = vsub.s32 0, %v284
      %v286 = vrot.slane %v281, %v285
      %v288 = vmul.f32 %v279, %v286
      %v289 = vmul.f32 %v280, %v286
      %v290 = vld [vmem:[%s6] sm:$0x1]
      %v292 = vlaneseq
      %v293 = vshrl.u32 %v292, 7
      %v294 = vsub.s32 0, %v293
      %v295 = vrot.slane %v290, %v294
      %v297 = vadd.f32 %v288, %v295
      %v298 = vadd.f32 %v289, %v295
      %299 = vst.msk [vmem:[#allocation3] sm:$0xff] %vm47, %v297
      %300 = vst.msk [vmem:[#allocation3 + $0x8] sm:$0xff] %vm47, %v298
    $region37: #{tpu_custom_call.1} parent=1 // pred_fallthru
      _
    // Predicated region
    $region38: #{tpu_custom_call.1} parent=1 // pred_check
      _
    $region39: #{tpu_custom_call.1} parent=1 // pred_check_branch
      %302 = sbr.rel (0) target = $region41
    $region40: #{tpu_custom_call.1} parent=1 // pred_region
      %s304 = ssub.s32 256, 256
      %305 = vsyncadd [#allocation4], %s304
      %s306 = sshll.u32 [#allocation3], 4
      %s307 = int_to_ptr.vmem [resolvable:$true] %s306
      %312 = dma.vmem_to_hbm [thread:$0]  %s307, 256, %s7, [#allocation4], 128, 128, 8
    $region41: #{tpu_custom_call.1} parent=1 // pred_fallthru
      _
    // Predicated region
    $region42: #{tpu_custom_call.1} parent=1 // pred_check
      _
    $region43: #{tpu_custom_call.1} parent=1 // pred_check_branch
      %314 = sbr.rel (0) target = $region45
    $region44: #{tpu_custom_call.1} parent=1 // pred_region
      %315 = dma.done [#allocation4], 256
    $region45: #{tpu_custom_call.1} parent=1 // pred_fallthru
      _
    %316 = vsyncpa [#allocation4], 1

</llo_original>
